<compile_context>
chip_gen: v5e
topology: v5e:2x2
jax: 0.10.0
libtpu: 0.0.40
codegen_flags: <defaults>
</compile_context>

<pallas_src>
import functools

import jax
import jax.numpy as jnp
import numpy as np
from jax.experimental import pallas as pl
from jax.experimental.pallas import tpu as pltpu

HIDDEN = 64

_VMEM = pl.BlockSpec(memory_space=pltpu.MemorySpace.VMEM)


def qnetwork_kernel(x_ref, w1_ref, w2_ref, out_ref, *, action_num,
                    action_scale):
    """Fully fused QNetwork forward for one batch tile.

    x_ref  : (B, S)      raw states
    w1_ref : (S+1, 64)   trunk weight with b1 folded in as its last row
    w2_ref : (65, na+1)  head-major fused head/value weights, biases in the
                         last row, value column last
    out_ref: (B, na)     [head0 | head1 | ...] advantages + value
    """
    b = x_ref.shape[0]
    na = action_num * action_scale
    ones = jnp.ones((b, 1), jnp.float32)

    # Trunk: relu([x | 1] @ W1_aug) -> (B, 64). One MXU push, no bias add.
    x_aug = jnp.concatenate([x_ref[...], ones], axis=-1)
    h = jnp.maximum(
        jnp.dot(x_aug, w1_ref[...], preferred_element_type=jnp.float32), 0.0)

    # All action heads + the value head in one MXU push:
    # relu([h | 1] @ W2_aug) -> (B, na+1).
    h_aug = jnp.concatenate([h, ones], axis=-1)
    z = jnp.maximum(
        jnp.dot(h_aug, w2_ref[...], preferred_element_type=jnp.float32), 0.0)

    v = z[:, na:na + 1]                                    # value column (B,1)

    # Per-head max (static lane slices -> XLU reduces), broadcast each max to
    # head width, concat ONCE, then a single full-width subtract/add + store.
    maxes = []
    for i in range(action_num):
        head = z[:, i * action_scale:(i + 1) * action_scale]
        m = jnp.max(head, axis=-1, keepdims=True)          # (B, 1)
        maxes.append(jnp.broadcast_to(m, (b, action_scale)))
    max_cat = jnp.concatenate(maxes, axis=-1)              # (B, na)

    out_ref[...] = z[:, :na] - max_cat + v


def fuse_params(params):
    """One-time parameter fusion (do NOT call inside the per-step hot path).

    Returns (w1_aug, w2_aug):
      w1_aug = [[W1], [b1]]                                 : (S+1, 64)
      w2_aug = [[Wa_h0 | ... | Wa_hN | Wv],
                [ba_h0 | ... | ba_hN | bv]]                 : (65, num*A + 1)

    NOTE: the fused second-layer columns are HEAD-MAJOR; the kernel's lane
    slicing depends on this ordering.
    """
    w1, b1, wa, ba, wv, bv = params
    action_num, hidden, action_scale = wa.shape
    assert hidden == HIDDEN
    na = action_num * action_scale

    wa_flat = jnp.transpose(wa, (1, 0, 2)).reshape(HIDDEN, na)  # head-major
    ba_flat = ba.reshape(1, na)
    w2 = jnp.concatenate([wa_flat, wv], axis=1)                 # (64, na+1)
    b2 = jnp.concatenate([ba_flat, bv], axis=1)                 # (1,  na+1)

    w1_aug = jnp.concatenate([w1, b1], axis=0)                  # (S+1, 64)
    w2_aug = jnp.concatenate([w2, b2], axis=0)                  # (65, na+1)
    return w1_aug, w2_aug


@functools.partial(
    jax.jit, static_argnames=("action_num", "action_scale", "batch_tile"))
def qnetwork_forward(x, w1_aug, w2_aug, *, action_num, action_scale,
                     batch_tile=None):
    """Fused forward pass.

    Returns a (B, action_num*action_scale) array; head i lives in columns
    [i*action_scale, (i+1)*action_scale).  Use split_heads() to recover the
    per-head list the original PyTorch module returns.
    """
    batch, state_space = x.shape
    na = action_num * action_scale
    kernel = functools.partial(
        qnetwork_kernel, action_num=action_num, action_scale=action_scale)
    out_shape = jax.ShapeDtypeStruct((batch, na), jnp.float32)

    if batch_tile is None or batch <= batch_tile:
        # Single program: right call for small batches; on 1-TC chips
        # (v5e/v6e) extra grid steps would just be serial pipeline overhead.
        return pl.pallas_call(
            kernel,
            out_shape=out_shape,
            in_specs=[_VMEM, _VMEM, _VMEM],
            out_specs=_VMEM,
        )(x, w1_aug, w2_aug)

    # Large-batch path: tile the batch so v7x's two TensorCores split the
    # grid and VMEM stays bounded; weights are replicated whole-array.
    assert batch_tile % 8 == 0, "batch_tile must be a multiple of 8 sublanes"
    return pl.pallas_call(
        kernel,
        out_shape=out_shape,
        grid=(pl.cdiv(batch, batch_tile),),
        in_specs=[
            pl.BlockSpec((batch_tile, state_space), lambda i: (i, 0)),
            pl.BlockSpec(w1_aug.shape, lambda i: (0, 0)),
            pl.BlockSpec(w2_aug.shape, lambda i: (0, 0)),
        ],
        out_specs=pl.BlockSpec((batch_tile, na), lambda i: (i, 0)),
        compiler_params=pltpu.CompilerParams(
            dimension_semantics=("parallel",)),
    )(x, w1_aug, w2_aug)


def split_heads(fused, action_num, action_scale):
    """Recover the per-head list the PyTorch module returns."""
    return [fused[:, i * action_scale:(i + 1) * action_scale]
            for i in range(action_num)]


def init_params(key, state_space, action_num, action_scale):
    """Deterministic PyTorch-style uniform init; weights stored as (in, out)."""
    ks = jax.random.split(key, 6)

    def unif(k, shape, fan_in):
        lim = 1.0 / np.sqrt(fan_in)
        return jax.random.uniform(k, shape, jnp.float32, -lim, lim)

    w1 = unif(ks[0], (state_space, HIDDEN), state_space)
    b1 = unif(ks[1], (1, HIDDEN), state_space)
    wa = unif(ks[2], (action_num, HIDDEN, action_scale), HIDDEN)
    ba = unif(ks[3], (action_num, action_scale), HIDDEN)
    wv = unif(ks[4], (HIDDEN, 1), HIDDEN)
    bv = unif(ks[5], (1, 1), HIDDEN)
    return (w1, b1, wa, ba, wv, bv)


def qnetwork_reference(x, params):
    """Pure-JAX reference matching the PyTorch forward exactly."""
    w1, b1, wa, ba, wv, bv = params
    h = jax.nn.relu(x @ w1 + b1)
    v = jax.nn.relu(h @ wv + bv)                       # (B, 1)
    outs = []
    for i in range(wa.shape[0]):
        a = jax.nn.relu(h @ wa[i] + ba[i][None, :])    # (B, A)
        a = a - jnp.max(a, axis=-1, keepdims=True)
        outs.append(a + v)
    return outs


if __name__ == "__main__":
    state_space, action_num, action_scale, batch = 8, 3, 6, 2

    key = jax.random.PRNGKey(0)
    kx, kp, kb = jax.random.split(key, 3)
    x = jax.random.normal(kx, (batch, state_space), jnp.float32)
    params = init_params(kp, state_space, action_num, action_scale)

    # One-time fusion (outside the per-call hot path).
    w1_aug, w2_aug = fuse_params(params)

    # Small-batch single-program path.
    fused = qnetwork_forward(
        x, w1_aug, w2_aug, action_num=action_num, action_scale=action_scale)
    fused = jax.block_until_ready(fused)
    actions = split_heads(fused, action_num, action_scale)

    ref = qnetwork_reference(x, params)
    for got, exp in zip(actions, ref):
        assert got.shape == (batch, action_scale)
        np.testing.assert_allclose(np.asarray(got), np.asarray(exp),
                                   rtol=1e-5, atol=1e-5)

    # Batch-tiled (grid) path — what large-B / v7x-megacore use — exercised
    # with a small tile just to verify the grid code path runs.
    xb = jax.random.normal(kb, (64, state_space), jnp.float32)
    fused_b = jax.block_until_ready(qnetwork_forward(
        xb, w1_aug, w2_aug, action_num=action_num,
        action_scale=action_scale, batch_tile=16))
    ref_b = qnetwork_reference(xb, params)
    for i, exp in enumerate(ref_b):
        np.testing.assert_allclose(
            np.asarray(fused_b[:, i * action_scale:(i + 1) * action_scale]),
            np.asarray(exp), rtol=1e-5, atol=1e-5)

    print("KERNEL_OK")
</pallas_src>

<mosaic_0001>
module attributes {stable_mosaic.version = 11 : i64} {
  func.func @qnetwork_kernel(%arg0: memref<2x8xf32, #tpu.memory_space<vmem>>, %arg1: memref<9x64xf32, #tpu.memory_space<vmem>>, %arg2: memref<65x19xf32, #tpu.memory_space<vmem>>, %arg3: memref<2x18xf32, #tpu.memory_space<vmem>>) attributes {dimension_semantics = [], scalar_prefetch = 0 : i64, scratch_operands = 0 : i64, tpu.core_type = #tpu.core_type<tc>} {
    %cst = arith.constant 1.000000e+00 : f32
    %0 = vector.broadcast %cst : f32 to vector<2x1xf32>
    %c0 = arith.constant 0 : index
    %c0_0 = arith.constant 0 : index
    %1 = vector.load %arg0[%c0, %c0_0] : memref<2x8xf32, #tpu.memory_space<vmem>>, vector<2x8xf32>
    %2 = tpu.concatenate %1, %0 in 1 : vector<2x8xf32>, vector<2x1xf32> -> vector<2x9xf32>
    %c0_1 = arith.constant 0 : index
    %c0_2 = arith.constant 0 : index
    %3 = vector.load %arg1[%c0_1, %c0_2] : memref<9x64xf32, #tpu.memory_space<vmem>>, vector<9x64xf32>
    %cst_3 = arith.constant dense<0.000000e+00> : vector<2x64xf32>
    %4 = tpu.matmul %2, %3, %cst_3 {dimension_numbers = #tpu.dot_dimension_numbers<[1], [0], [0], [1], [0, 0, 1, 1], [], []>} : vector<2x9xf32>, vector<9x64xf32>, vector<2x64xf32> -> vector<2x64xf32>
    %cst_4 = arith.constant 0.000000e+00 : f32
    %5 = vector.broadcast %cst_4 : f32 to vector<2x64xf32>
    %6 = arith.maximumf %4, %5 : vector<2x64xf32>
    %7 = tpu.concatenate %6, %0 in 1 : vector<2x64xf32>, vector<2x1xf32> -> vector<2x65xf32>
    %c0_5 = arith.constant 0 : index
    %c0_6 = arith.constant 0 : index
    %8 = vector.load %arg2[%c0_5, %c0_6] : memref<65x19xf32, #tpu.memory_space<vmem>>, vector<65x19xf32>
    %cst_7 = arith.constant dense<0.000000e+00> : vector<2x19xf32>
    %9 = tpu.matmul %7, %8, %cst_7 {dimension_numbers = #tpu.dot_dimension_numbers<[1], [0], [0], [1], [0, 0, 1, 1], [], []>} : vector<2x65xf32>, vector<65x19xf32>, vector<2x19xf32> -> vector<2x19xf32>
    %cst_8 = arith.constant 0.000000e+00 : f32
    %10 = vector.broadcast %cst_8 : f32 to vector<2x19xf32>
    %11 = arith.maximumf %9, %10 : vector<2x19xf32>
    %12 = vector.extract_strided_slice %11 {offsets = [0, 18], sizes = [2, 1], strides = [1, 1]} : vector<2x19xf32> to vector<2x1xf32>
    %13 = vector.extract_strided_slice %11 {offsets = [0, 0], sizes = [2, 6], strides = [1, 1]} : vector<2x19xf32> to vector<2x6xf32>
    %cst_9 = arith.constant dense<0xFF800000> : vector<2xf32>
    %14 = vector.multi_reduction <maximumf>, %13, %cst_9 [1] : vector<2x6xf32> to vector<2xf32>
    %15 = vector.shape_cast %14 : vector<2xf32> to vector<2x1xf32>
    %16 = vector.shape_cast %15 : vector<2x1xf32> to vector<2x1xf32>
    %17 = vector.broadcast %16 : vector<2x1xf32> to vector<2x6xf32>
    %18 = vector.extract_strided_slice %11 {offsets = [0, 6], sizes = [2, 6], strides = [1, 1]} : vector<2x19xf32> to vector<2x6xf32>
    %cst_10 = arith.constant dense<0xFF800000> : vector<2xf32>
    %19 = vector.multi_reduction <maximumf>, %18, %cst_10 [1] : vector<2x6xf32> to vector<2xf32>
    %20 = vector.shape_cast %19 : vector<2xf32> to vector<2x1xf32>
    %21 = vector.shape_cast %20 : vector<2x1xf32> to vector<2x1xf32>
    %22 = vector.broadcast %21 : vector<2x1xf32> to vector<2x6xf32>
    %23 = vector.extract_strided_slice %11 {offsets = [0, 12], sizes = [2, 6], strides = [1, 1]} : vector<2x19xf32> to vector<2x6xf32>
    %cst_11 = arith.constant dense<0xFF800000> : vector<2xf32>
    %24 = vector.multi_reduction <maximumf>, %23, %cst_11 [1] : vector<2x6xf32> to vector<2xf32>
    %25 = vector.shape_cast %24 : vector<2xf32> to vector<2x1xf32>
    %26 = vector.shape_cast %25 : vector<2x1xf32> to vector<2x1xf32>
    %27 = vector.broadcast %26 : vector<2x1xf32> to vector<2x6xf32>
    %28 = tpu.concatenate %17, %22, %27 in 1 : vector<2x6xf32>, vector<2x6xf32>, vector<2x6xf32> -> vector<2x18xf32>
    %29 = vector.extract_strided_slice %11 {offsets = [0, 0], sizes = [2, 18], strides = [1, 1]} : vector<2x19xf32> to vector<2x18xf32>
    %30 = arith.subf %29, %28 : vector<2x18xf32>
    %31 = vector.broadcast %12 : vector<2x1xf32> to vector<2x18xf32>
    %32 = arith.addf %30, %31 : vector<2x18xf32>
    %c0_12 = arith.constant 0 : index
    %c0_13 = arith.constant 0 : index
    %33 = vector.load %arg3[%c0_12, %c0_13] : memref<2x18xf32, #tpu.memory_space<vmem>>, vector<2x18xf32>
    tpu.vector_store %arg3[%c0_12, %c0_13], %32 {strides = array<i32>} : memref<2x18xf32, #tpu.memory_space<vmem>>, vector<2x18xf32>,
    return
  }
}

</mosaic_0001>

<llo_original>
// kernel: qnetwork_forward.1
$region0: #{qnetwork_forward.1}
  #allocation0 [shape = 'u32[]', space=smem, size = 0x4, offset = 0x4, fixed_abs, tag = 'smem constant byte address 0x4 - core index']
  #allocation1 [shape = 'u32[72,128]{1,0:T(1,128)}', space=vmem, size = 0x9000, scoped, tag = 'internal scratch']
  %s0 = inlined_call_operand.vmem [shape: f32[2,8], index: 0, kind: input, shape index: {}]
  %s1 = inlined_call_operand.vmem [shape: f32[9,64], index: 1, kind: input, shape index: {}]
  %s2 = inlined_call_operand.vmem [shape: f32[65,19], index: 2, kind: input, shape index: {}]
  %s3 = inlined_call_operand.hbm [shape: f32[2,18], index: 3, kind: output, shape index: {}]
  %s4 = sld [smem:[#allocation0]]
  $region22: #{qnetwork_forward.1} parent=0
    _
  %s6 = ssub.s32 1, %s4
  %s7 = scalar_select 0, %s6, %s4
  $region1: #{qnetwork_forward.1} parent=0
    #allocation2 [shape = 'u8[1024]{0}', space=vmem, size = 0x400, scoped, tag = 'output window, operand 0, single buffered']
    #allocation3 [shape = 's32[1]{0}', space=sflag, size = 0x4, scoped, tag = 'scoped memory for qnetwork_forward.1']
    %8 = vsyncpa [#allocation3], 0
    // Predicated region
    $region2: #{qnetwork_forward.1} parent=1 // pred_check
      _
    $region3: #{qnetwork_forward.1} parent=1 // pred_check_branch
      %10 = sbr.rel (0) target = $region5
    $region4: #{qnetwork_forward.1} parent=1 // pred_region
      _
    $region5: #{qnetwork_forward.1} parent=1 // pred_fallthru
      _
    // Predicated region
    $region6: #{qnetwork_forward.1} parent=1 // pred_check
      _
    $region7: #{qnetwork_forward.1} parent=1 // pred_check_branch
      %12 = sbr.rel (0) target = $region9
    $region8: #{qnetwork_forward.1} parent=1 // pred_region
      _
    $region9: #{qnetwork_forward.1} parent=1 // pred_fallthru
      _
    // Predicated region
    $region10: #{qnetwork_forward.1} parent=1 // pred_check
      _
    $region11: #{qnetwork_forward.1} parent=1 // pred_check_branch
      %14 = sbr.rel (0) target = $region13
    $region12: #{qnetwork_forward.1} parent=1 // pred_region
      _
    $region13: #{qnetwork_forward.1} parent=1 // pred_fallthru
      _
    %v15 = vld [vmem:[%s0] sm:$0x3]
    %vm16 = vcmask 64512
    %v17 = vsel %vm16, %v15, 1.0
    %v18 = vld [vmem:[%s1] sm:$0xff]
    %v19 = vld [vmem:[%s1 + $0x8] sm:$0x1]
    %vm20 = vcmask 72704
    %v22 = vsel %vm20, %v17, 0
    %vm24 = vcmask 1040384
    %v26 = vsel %vm24, %v19, 0
    %28 = vmatpush.msra.mxu0 0.0
    %29 = vmatpush.msra.mxu0 0.0
    %30 = vmatpush.msra.mxu0 0.0
    %31 = vmatpush.msra.mxu0 0.0
    %32 = vmatpush.msra.mxu0 0.0
    %33 = vmatpush.msra.mxu0 0.0
    %34 = vmatpush.msra.mxu0 0.0
    %35 = vmatpush.msra.mxu0 0.0
    %36 = vmatpush.msra.mxu0 0.0
    %37 = vmatpush.msra.mxu0 0.0
    %38 = vmatpush.msra.mxu0 0.0
    %39 = vmatpush.msra.mxu0 0.0
    %40 = vmatpush.msra.mxu0 0.0
    %41 = vmatpush.msra.mxu0 0.0
    %42 = vmatpush.msra.mxu0 %v26
    %43 = vmatpush.msra.mxu0 %v18
    %44 = vmatmul.f32.gmra.mxu0 %v22
    %v45 = vpop.f32.mrf.mxu0
    %v46 = vadd.f32 0.0, %v45
    %47 = vdwg.mxu0
    %v48 = vmax.f32 %v46, 0.0
    %vm49 = vcmask 523264
    %v50 = vsel %vm49, %v48, 1.0
    %v51 = vld [vmem:[%s2] sm:$0xff]
    %v52 = vld [vmem:[%s2 + $0x8] sm:$0xff]
    %v53 = vld [vmem:[%s2 + $0x10] sm:$0xff]
    %v54 = vld [vmem:[%s2 + $0x18] sm:$0xff]
    %v55 = vld [vmem:[%s2 + $0x20] sm:$0xff]
    %v56 = vld [vmem:[%s2 + $0x28] sm:$0xff]
    %v57 = vld [vmem:[%s2 + $0x30] sm:$0xff]
    %v58 = vld [vmem:[%s2 + $0x38] sm:$0xff]
    %v59 = vld [vmem:[%s2 + $0x40] sm:$0x1]
    %vm60 = vcmask 531456
    %v62 = vsel %vm60, %v50, 0
    %v65 = vsel %vm24, %v59, 0
    %67 = vmatpush.msra.mxu0 0.0
    %68 = vmatpush.msra.mxu0 0.0
    %69 = vmatpush.msra.mxu0 0.0
    %70 = vmatpush.msra.mxu0 0.0
    %71 = vmatpush.msra.mxu0 0.0
    %72 = vmatpush.msra.mxu0 0.0
    %73 = vmatpush.msra.mxu0 0.0
    %74 = vmatpush.msra.mxu0 %v65
    %75 = vmatpush.msra.mxu0 %v58
    %76 = vmatpush.msra.mxu0 %v57
    %77 = vmatpush.msra.mxu0 %v56
    %78 = vmatpush.msra.mxu0 %v55
    %79 = vmatpush.msra.mxu0 %v54
    %80 = vmatpush.msra.mxu0 %v53
    %81 = vmatpush.msra.mxu0 %v52
    %82 = vmatpush.msra.mxu0 %v51
    %83 = vmatmul.f32.gmra.mxu0 %v62
    %v84 = vpop.f32.mrf.mxu0
    %v85 = vadd.f32 0.0, %v84
    %86 = vdwg.mxu0
    %v87 = vmax.f32 %v85, 0.0
    %vm88 = vcmask 41984
    %v89 = vsel %vm88, %v87, -inf
    %90 = vmax.xlane.f32.xlu0 %v89
    %v91 = vpop.xlane.xlu0 %90
    %vm92 = vcmask 91184
    %v93 = vsel %vm92, %v87, -inf
    %94 = vmax.xlane.f32.xlu0 %v93
    %v95 = vpop.xlane.xlu0 %94
    %vm96 = vcmask 140384
    %v97 = vsel %vm96, %v87, -inf
    %98 = vmax.xlane.f32.xlu0 %v97
    %v99 = vpop.xlane.xlu0 %98
    %vm100 = vcmask 48128
    %v101 = vsel %vm100, %v91, %v95
    %vm102 = vcmask 97280
    %v103 = vsel %vm102, %v101, %v99
    %v104 = vsub.f32 %v87, %v103
    %106 = vset.pattern.permute.xlu0 18
    %107 = vperm.xlu0 %106, %v87
    %v108 = vpop.permute.xlu0 %107
    %v110 = vadd.f32 %v104, %v108
    %vm111 = vcmask 140288
    %112 = vst.msk [vmem:[#allocation2] sm:$0x3] %vm111, %v110
    // Predicated region
    $region14: #{qnetwork_forward.1} parent=1 // pred_check
      _
    $region15: #{qnetwork_forward.1} parent=1 // pred_check_branch
      %114 = sbr.rel (0) target = $region17
    $region16: #{qnetwork_forward.1} parent=1 // pred_region
      %116 = vsyncadd [#allocation3], 0
      %s118 = sshll.u32 [#allocation2], 4
      %s119 = int_to_ptr.vmem [resolvable:$true] %s118
      %s120 = sshll.u32 %s3, 4
      %s121 = int_to_ptr.hbm [resolvable:$true] %s120
      %123 = dma.vmem_to_hbm [thread:$0]  %s119, 32, %s121, [#allocation3]
    $region17: #{qnetwork_forward.1} parent=1 // pred_fallthru
      _
    // Predicated region
    $region18: #{qnetwork_forward.1} parent=1 // pred_check
      _
    $region19: #{qnetwork_forward.1} parent=1 // pred_check_branch
      %125 = sbr.rel (0) target = $region21
    $region20: #{qnetwork_forward.1} parent=1 // pred_region
      %127 = dma.done [#allocation3], 32
    $region21: #{qnetwork_forward.1} parent=1 // pred_fallthru
      _
    %128 = vsyncpa [#allocation3], 1

</llo_original>
